<compile_context>
chip_gen: v5e
topology: v5e:2x2
jax: 0.10.0
libtpu: 0.0.40
codegen_flags: <defaults>
</compile_context>

<pallas_src>
import math
from functools import partial

import jax
import jax.numpy as jnp
from jax.experimental import pallas as pl
from jax.experimental.pallas import tpu as pltpu

HIDDEN = 512
LANES = 128            # lane-dense output width (unmasked stores)
DEFAULT_BLOCK_B = 128  # batch tile = MXU height on v5e; also fine on v6e/v7x


def _round_up(n, m):
    return ((n + m - 1) // m) * m


def _baseline_kernel(x_ref, w1_ref, b1_ref, w2_ref, b2_ref, o_ref):
    """One batch tile of the Baseline MLP.

    x_ref : (TB, F)        observation rows
    w1_ref: (F, 512)       layer-1 weights, (in, out) layout
    b1_ref: (1, 512)       layer-1 bias
    w2_ref: (1, 512)       layer-2 weights as a row (transpose of (512, 1))
    b2_ref: (1, 1)  SMEM   layer-2 bias (scalar)
    o_ref : (TB, 128)      lane-dense output; column 0 holds the result
    """
    # Layer 1 on the MXU with f32 accumulation, then bias + ReLU on the VPU.
    h = jnp.dot(x_ref[...], w1_ref[...], preferred_element_type=jnp.float32)
    h = jnp.maximum(h + b1_ref[...], 0.0)

    # Layer 2: (TB, 512) @ (512, 1) is N=1-degenerate on the MXU, so compute it
    # as a VPU multiply + lane reduction instead (uses otherwise-idle slots).
    y = jnp.sum(h * w2_ref[...], axis=-1, keepdims=True) + b2_ref[0, 0]  # (TB, 1)

    # Lane-dense store (unmasked vst); the wrapper slices column 0.
    o_ref[...] = jnp.broadcast_to(y, o_ref.shape)


def prepare_params(w1, b1, w2, b2):
    """One-time cast/reshape of parameters (hoisted out of the per-call path)."""
    f = w1.shape[0]
    assert w1.shape == (f, HIDDEN) and w2.shape == (HIDDEN, 1)
    return (
        w1.astype(jnp.float32),                     # (F, 512)
        b1.reshape(1, HIDDEN).astype(jnp.float32),  # (1, 512)
        w2.reshape(1, HIDDEN).astype(jnp.float32),  # (1, 512) row
        b2.reshape(1, 1).astype(jnp.float32),       # (1, 1) SMEM scalar
    )


@partial(jax.jit, static_argnames=("block_b",))
def baseline_forward_batched(x, params, *, block_b=DEFAULT_BLOCK_B):
    """Batched Baseline forward: x (B, F) -> (B, 1)."""
    w1, b1_row, w2_row, b2_s = params
    b, f = x.shape
    assert f == w1.shape[0]
    x = x.astype(jnp.float32)

    # Batch tile: multiple of 8 sublanes, capped at block_b (MXU height).
    tb = min(block_b, _round_up(b, 8))
    padded_b = _round_up(b, tb)
    if padded_b != b:
        x = jnp.pad(x, ((0, padded_b - b), (0, 0)))

    out = pl.pallas_call(
        _baseline_kernel,
        out_shape=jax.ShapeDtypeStruct((padded_b, LANES), jnp.float32),
        grid=(padded_b // tb,),
        in_specs=[
            pl.BlockSpec((tb, f), lambda i: (i, 0)),            # x: batch tile
            pl.BlockSpec((f, HIDDEN), lambda i: (0, 0)),        # w1: VMEM-resident
            pl.BlockSpec((1, HIDDEN), lambda i: (0, 0)),        # b1: VMEM-resident
            pl.BlockSpec((1, HIDDEN), lambda i: (0, 0)),        # w2 row: VMEM-resident
            pl.BlockSpec(memory_space=pltpu.MemorySpace.SMEM),  # b2 scalar
        ],
        out_specs=pl.BlockSpec((tb, LANES), lambda i: (i, 0)),
        compiler_params=pltpu.CompilerParams(
            dimension_semantics=("parallel",)  # v7x: split batch across both TCs
        ),
    )(x, w1, b1_row, w2_row, b2_s)

    return out[:b, :1]


def baseline_forward(x, params):
    """Exact Baseline.forward semantics: flatten to (1, F), return (1, 1)."""
    return baseline_forward_batched(x.reshape(1, -1), params)


def init_params(key, in_features):
    """Deterministic init mimicking nn.Linear default (uniform +-1/sqrt(fan_in))."""
    k1, k2, k3, k4 = jax.random.split(key, 4)
    bound1 = 1.0 / math.sqrt(in_features)
    w1 = jax.random.uniform(k1, (in_features, HIDDEN), jnp.float32, -bound1, bound1)
    b1 = jax.random.uniform(k2, (HIDDEN,), jnp.float32, -bound1, bound1)
    bound2 = 1.0 / math.sqrt(HIDDEN)
    w2 = jax.random.uniform(k3, (HIDDEN, 1), jnp.float32, -bound2, bound2)
    b2 = jax.random.uniform(k4, (1,), jnp.float32, -bound2, bound2)
    return w1, b1, w2, b2


def _reference(x_rows, w1, b1, w2, b2):
    h = jnp.maximum(
        jnp.dot(x_rows, w1, precision=jax.lax.Precision.HIGHEST) + b1, 0.0
    )
    return jnp.dot(h, w2, precision=jax.lax.Precision.HIGHEST) + b2


if __name__ == "__main__":
    # CartPole-style observation: input_shape = (4,) => F = 4
    input_shape = (4,)
    in_features = 1
    for d in input_shape:
        in_features *= d

    key = jax.random.PRNGKey(0)
    k_x, k_p, k_b = jax.random.split(key, 3)
    x = jax.random.normal(k_x, input_shape, dtype=jnp.float32)
    w1, b1, w2, b2 = init_params(k_p, in_features)
    params = prepare_params(w1, b1, w2, b2)

    # 1) Single-observation forward — exact Baseline.forward semantics.
    out = jax.block_until_ready(baseline_forward(x, params))
    ref = _reference(x.reshape(1, -1), w1, b1, w2, b2)
    assert out.shape == (1, 1)
    assert jnp.allclose(out, ref, atol=1e-4, rtol=1e-4)

    # 2) Batched rollout-style path: exercises grid > 1 and batch padding.
    B = 20
    xb = jax.random.normal(k_b, (B, in_features), dtype=jnp.float32)
    outb = jax.block_until_ready(baseline_forward_batched(xb, params, block_b=8))
    refb = _reference(xb, w1, b1, w2, b2)
    assert outb.shape == (B, 1)
    assert jnp.allclose(outb, refb, atol=1e-4, rtol=1e-4)

    print("KERNEL_OK")
</pallas_src>

<mosaic_0001>
module attributes {stable_mosaic.version = 11 : i64} {
  func.func @_baseline_kernel(%arg0: i32, %arg1: memref<8x4xf32, #tpu.memory_space<vmem>>, %arg2: memref<4x512xf32, #tpu.memory_space<vmem>>, %arg3: memref<1x512xf32, #tpu.memory_space<vmem>>, %arg4: memref<1x512xf32, #tpu.memory_space<vmem>>, %arg5: memref<1x1xf32, #tpu.memory_space<smem>>, %arg6: memref<8x128xf32, #tpu.memory_space<vmem>>) attributes {dimension_semantics = [#tpu.dimension_semantics<parallel>], iteration_bounds = array<i64: 1>, scalar_prefetch = 0 : i64, scratch_operands = 0 : i64, tpu.core_type = #tpu.core_type<tc>, window_params = [{transform_indices = @transform_0, window_bounds = array<i64: 8, 4>}, {pipeline_mode = #tpu.pipeline_mode<synchronous>, transform_indices = @transform_1, window_bounds = array<i64: 4, 512>}, {pipeline_mode = #tpu.pipeline_mode<synchronous>, transform_indices = @transform_2, window_bounds = array<i64: 1, 512>}, {pipeline_mode = #tpu.pipeline_mode<synchronous>, transform_indices = @transform_3, window_bounds = array<i64: 1, 512>}, {transform_indices = @transform_4, window_bounds = array<i64: 1, 1>}, {transform_indices = @transform_5, window_bounds = array<i64: 8, 128>}]} {
    %c0 = arith.constant 0 : index
    %c0_0 = arith.constant 0 : index
    %0 = vector.load %arg1[%c0, %c0_0] : memref<8x4xf32, #tpu.memory_space<vmem>>, vector<8x4xf32>
    %c0_1 = arith.constant 0 : index
    %c0_2 = arith.constant 0 : index
    %1 = vector.load %arg2[%c0_1, %c0_2] : memref<4x512xf32, #tpu.memory_space<vmem>>, vector<4x512xf32>
    %cst = arith.constant dense<0.000000e+00> : vector<8x512xf32>
    %2 = tpu.matmul %0, %1, %cst {dimension_numbers = #tpu.dot_dimension_numbers<[1], [0], [0], [1], [0, 0, 1, 1], [], []>} : vector<8x4xf32>, vector<4x512xf32>, vector<8x512xf32> -> vector<8x512xf32>
    %c0_3 = arith.constant 0 : index
    %c0_4 = arith.constant 0 : index
    %3 = vector.load %arg3[%c0_3, %c0_4] : memref<1x512xf32, #tpu.memory_space<vmem>>, vector<1x512xf32>
    %4 = vector.broadcast %3 : vector<1x512xf32> to vector<8x512xf32>
    %5 = arith.addf %2, %4 : vector<8x512xf32>
    %cst_5 = arith.constant 0.000000e+00 : f32
    %6 = vector.broadcast %cst_5 : f32 to vector<8x512xf32>
    %7 = arith.maximumf %5, %6 : vector<8x512xf32>
    %c0_6 = arith.constant 0 : index
    %c0_7 = arith.constant 0 : index
    %8 = vector.load %arg4[%c0_6, %c0_7] : memref<1x512xf32, #tpu.memory_space<vmem>>, vector<1x512xf32>
    %9 = vector.broadcast %8 : vector<1x512xf32> to vector<8x512xf32>
    %10 = arith.mulf %7, %9 : vector<8x512xf32>
    %cst_8 = arith.constant dense<0.000000e+00> : vector<8xf32>
    %11 = vector.multi_reduction <add>, %10, %cst_8 [1] : vector<8x512xf32> to vector<8xf32>
    %12 = vector.shape_cast %11 : vector<8xf32> to vector<8x1xf32>
    %c0_9 = arith.constant 0 : index
    %c0_10 = arith.constant 0 : index
    %13 = memref.load %arg5[%c0_9, %c0_10] : memref<1x1xf32, #tpu.memory_space<smem>>
    %14 = vector.broadcast %13 : f32 to vector<8x1xf32>
    %15 = arith.addf %12, %14 : vector<8x1xf32>
    %16 = vector.shape_cast %15 : vector<8x1xf32> to vector<8x1xf32>
    %17 = vector.broadcast %16 : vector<8x1xf32> to vector<8x128xf32>
    %c0_11 = arith.constant 0 : index
    %c0_12 = arith.constant 0 : index
    %18 = vector.load %arg6[%c0_11, %c0_12] : memref<8x128xf32, #tpu.memory_space<vmem>>, vector<8x128xf32>
    tpu.vector_store %arg6[%c0_11, %c0_12], %17 {strides = array<i32>} : memref<8x128xf32, #tpu.memory_space<vmem>>, vector<8x128xf32>,
    return
  }
  func.func @transform_0(%arg0: i32) -> (i32, i32) {
    %c0_i32 = arith.constant 0 : i32
    %c0_i32_0 = arith.constant 0 : i32
    return %arg0, %c0_i32 : i32, i32
  }
  func.func @transform_1(%arg0: i32) -> (i32, i32) {
    %c0_i32 = arith.constant 0 : i32
    %c0_i32_0 = arith.constant 0 : i32
    %c0_i32_1 = arith.constant 0 : i32
    return %c0_i32, %c0_i32_0 : i32, i32
  }
  func.func @transform_2(%arg0: i32) -> (i32, i32) {
    %c0_i32 = arith.constant 0 : i32
    %c0_i32_0 = arith.constant 0 : i32
    %c0_i32_1 = arith.constant 0 : i32
    return %c0_i32, %c0_i32_0 : i32, i32
  }
  func.func @transform_3(%arg0: i32) -> (i32, i32) {
    %c0_i32 = arith.constant 0 : i32
    %c0_i32_0 = arith.constant 0 : i32
    %c0_i32_1 = arith.constant 0 : i32
    return %c0_i32, %c0_i32_0 : i32, i32
  }
  func.func @transform_4(%arg0: i32) -> (i32, i32) {
    %c0_i32 = arith.constant 0 : i32
    %c0_i32_0 = arith.constant 0 : i32
    %c0_i32_1 = arith.constant 0 : i32
    return %c0_i32, %c0_i32_0 : i32, i32
  }
  func.func @transform_5(%arg0: i32) -> (i32, i32) {
    %c0_i32 = arith.constant 0 : i32
    %c0_i32_0 = arith.constant 0 : i32
    return %arg0, %c0_i32 : i32, i32
  }
}

</mosaic_0001>

<llo_original>
// kernel: baseline_forward_batched.1
$region0: #{baseline_forward_batched.1}
  #allocation0 [shape = 'u32[]', space=smem, size = 0x4, offset = 0x4, fixed_abs, tag = 'smem constant byte address 0x4 - core index']
  #allocation1 [shape = 'u32[72,128]{1,0:T(1,128)}', space=vmem, size = 0x9000, scoped, tag = 'internal scratch']
  #allocation2 [shape = 'f32[1,1]{1,0:T(1,128)S(6)}', space=smem, size = 0x200, scoped, tag = 'scoped memory for baseline_forward_batched.1']
  %s0 = inlined_call_operand.vmem [shape: f32[8,4], index: 0, kind: input, shape index: {}]
  %s1 = inlined_call_operand.hbm [shape: f32[4,512], index: 1, kind: input, shape index: {}]
  %s2 = inlined_call_operand.vmem [shape: f32[1,512], index: 2, kind: input, shape index: {}]
  %s3 = inlined_call_operand.vmem [shape: f32[1,512], index: 3, kind: input, shape index: {}]
  %s4 = inlined_call_operand.<no memory space> [shape: f32[1,1], index: 4, kind: input, shape index: {}]
  %s5 = inlined_call_operand.vmem [shape: f32[8,128], index: 5, kind: output, shape index: {}]
  %s6 = sld [smem:[#allocation0]]
  $region34: #{baseline_forward_batched.1} parent=0
    _
  %s8 = ssub.s32 1, %s6
  %s9 = scalar_select 0, %s8, %s6
  %10 = sst [smem:[#allocation2]] %s4
  $region1: #{baseline_forward_batched.1} parent=0
    #allocation3 [shape = 'u8[8192]{0}', space=vmem, size = 0x2000, scoped, tag = 'input window, operand 1, single buffered']
    #allocation4 [shape = 's32[1]{0}', space=sflag, size = 0x4, scoped, tag = 'scoped memory for baseline_forward_batched.1']
    %11 = vsyncpa [#allocation4], 0
    // Predicated region
    $region2: #{baseline_forward_batched.1} parent=1 // pred_check
      _
    $region3: #{baseline_forward_batched.1} parent=1 // pred_check_branch
      %13 = sbr.rel (0) target = $region5
    $region4: #{baseline_forward_batched.1} parent=1 // pred_region
      _
    $region5: #{baseline_forward_batched.1} parent=1 // pred_fallthru
      _
    // Predicated region
    $region6: #{baseline_forward_batched.1} parent=1 // pred_check
      _
    $region7: #{baseline_forward_batched.1} parent=1 // pred_check_branch
      %15 = sbr.rel (0) target = $region9
    $region8: #{baseline_forward_batched.1} parent=1 // pred_region
      %17 = vsyncadd [#allocation4], 0
      %s19 = sshll.u32 %s1, 4
      %s20 = int_to_ptr.hbm [resolvable:$true] %s19
      %s21 = sshll.u32 [#allocation3], 4
      %s22 = int_to_ptr.vmem [resolvable:$true] %s21
      %24 = dma.hbm_to_vmem [thread:$0]  %s20, 256, %s22, [#allocation4]
    $region9: #{baseline_forward_batched.1} parent=1 // pred_fallthru
      _
    // Predicated region
    $region10: #{baseline_forward_batched.1} parent=1 // pred_check
      _
    $region11: #{baseline_forward_batched.1} parent=1 // pred_check_branch
      %26 = sbr.rel (0) target = $region13
    $region12: #{baseline_forward_batched.1} parent=1 // pred_region
      _
    $region13: #{baseline_forward_batched.1} parent=1 // pred_fallthru
      _
    // Predicated region
    $region14: #{baseline_forward_batched.1} parent=1 // pred_check
      _
    $region15: #{baseline_forward_batched.1} parent=1 // pred_check_branch
      %28 = sbr.rel (0) target = $region17
    $region16: #{baseline_forward_batched.1} parent=1 // pred_region
      _
    $region17: #{baseline_forward_batched.1} parent=1 // pred_fallthru
      _
    // Predicated region
    $region18: #{baseline_forward_batched.1} parent=1 // pred_check
      _
    $region19: #{baseline_forward_batched.1} parent=1 // pred_check_branch
      %30 = sbr.rel (0) target = $region21
    $region20: #{baseline_forward_batched.1} parent=1 // pred_region
      _
    $region21: #{baseline_forward_batched.1} parent=1 // pred_fallthru
      _
    // Predicated region
    $region22: #{baseline_forward_batched.1} parent=1 // pred_check
      _
    $region23: #{baseline_forward_batched.1} parent=1 // pred_check_branch
      %32 = sbr.rel (0) target = $region25
    $region24: #{baseline_forward_batched.1} parent=1 // pred_region
      %34 = dma.done [#allocation4], 256
    $region25: #{baseline_forward_batched.1} parent=1 // pred_fallthru
      _
    %v35 = vld [vmem:[%s0] sm:$0xff]
    %v36 = vld [vmem:[#allocation3] sm:$0xff]
    %v37 = vld [vmem:[#allocation3 + $0x8] sm:$0xff]
    %v38 = vld [vmem:[%s2] sm:$0xf]
    %v40 = vperm.slane %v38, 0
    %v41 = vperm.slane %v38, 1
    %v42 = vperm.slane %v38, 2
    %v43 = vperm.slane %v38, 3
    %50 = vst [vmem:[#allocation1] ss:$2 sm:$0xff] %v36
    %s51 = scalar_lea.vmem [#allocation1], 16
    %52 = vst [vmem:[%s51] ss:$2 sm:$0xff] %v37
    %v53 = vld.sshfl [vmem:[#allocation1] sm:$0xff pattern:$0x75316420]
    %v54 = vld.sshfl [vmem:[#allocation1 + $0x8] sm:$0xff pattern:$0x75316420]
    %v55 = vld.sshfl [vmem:[#allocation1 + $0x10] sm:$0xff pattern:$0x75316420]
    %v56 = vld.sshfl [vmem:[#allocation1 + $0x18] sm:$0xff pattern:$0x75316420]
    %vm57 = vcmask 31744
    %v59 = vsel %vm57, %v35, 0
    %vm61 = vcmask 1043456
    %v62 = vsel %vm61, %v53, 0
    %v64 = vsel %vm61, %v54, 0
    %v66 = vsel %vm61, %v55, 0
    %v68 = vsel %vm61, %v56, 0
    %70 = vmatpush.msra.mxu0 0.0
    %71 = vmatpush.msra.mxu0 0.0
    %72 = vmatpush.msra.mxu0 0.0
    %73 = vmatpush.msra.mxu0 0.0
    %74 = vmatpush.msra.mxu0 0.0
    %75 = vmatpush.msra.mxu0 0.0
    %76 = vmatpush.msra.mxu0 0.0
    %77 = vmatpush.msra.mxu0 0.0
    %78 = vmatpush.msra.mxu0 0.0
    %79 = vmatpush.msra.mxu0 0.0
    %80 = vmatpush.msra.mxu0 0.0
    %81 = vmatpush.msra.mxu0 0.0
    %82 = vmatpush.msra.mxu0 0.0
    %83 = vmatpush.msra.mxu0 0.0
    %84 = vmatpush.msra.mxu0 0.0
    %85 = vmatpush.msra.mxu0 %v62
    %86 = vmatmul.f32.gmra.mxu0 %v59
    %v87 = vpop.f32.mrf.mxu0
    %v88 = vadd.f32 %v40, %v87
    %89 = vdwg.mxu0
    %90 = vmatpush.msra.mxu0 0.0
    %91 = vmatpush.msra.mxu0 0.0
    %92 = vmatpush.msra.mxu0 0.0
    %93 = vmatpush.msra.mxu0 0.0
    %94 = vmatpush.msra.mxu0 0.0
    %95 = vmatpush.msra.mxu0 0.0
    %96 = vmatpush.msra.mxu0 0.0
    %97 = vmatpush.msra.mxu0 0.0
    %98 = vmatpush.msra.mxu0 0.0
    %99 = vmatpush.msra.mxu0 0.0
    %100 = vmatpush.msra.mxu0 0.0
    %101 = vmatpush.msra.mxu0 0.0
    %102 = vmatpush.msra.mxu0 0.0
    %103 = vmatpush.msra.mxu0 0.0
    %104 = vmatpush.msra.mxu0 0.0
    %105 = vmatpush.msra.mxu0 %v64
    %106 = vmatmul.f32.gmra.mxu0 %v59
    %v107 = vpop.f32.mrf.mxu0
    %v108 = vadd.f32 %v41, %v107
    %109 = vdwg.mxu0
    %110 = vmatpush.msra.mxu0 0.0
    %111 = vmatpush.msra.mxu0 0.0
    %112 = vmatpush.msra.mxu0 0.0
    %113 = vmatpush.msra.mxu0 0.0
    %114 = vmatpush.msra.mxu0 0.0
    %115 = vmatpush.msra.mxu0 0.0
    %116 = vmatpush.msra.mxu0 0.0
    %117 = vmatpush.msra.mxu0 0.0
    %118 = vmatpush.msra.mxu0 0.0
    %119 = vmatpush.msra.mxu0 0.0
    %120 = vmatpush.msra.mxu0 0.0
    %121 = vmatpush.msra.mxu0 0.0
    %122 = vmatpush.msra.mxu0 0.0
    %123 = vmatpush.msra.mxu0 0.0
    %124 = vmatpush.msra.mxu0 0.0
    %125 = vmatpush.msra.mxu0 %v66
    %126 = vmatmul.f32.gmra.mxu0 %v59
    %v127 = vpop.f32.mrf.mxu0
    %v128 = vadd.f32 %v42, %v127
    %129 = vdwg.mxu0
    %130 = vmatpush.msra.mxu0 0.0
    %131 = vmatpush.msra.mxu0 0.0
    %132 = vmatpush.msra.mxu0 0.0
    %133 = vmatpush.msra.mxu0 0.0
    %134 = vmatpush.msra.mxu0 0.0
    %135 = vmatpush.msra.mxu0 0.0
    %136 = vmatpush.msra.mxu0 0.0
    %137 = vmatpush.msra.mxu0 0.0
    %138 = vmatpush.msra.mxu0 0.0
    %139 = vmatpush.msra.mxu0 0.0
    %140 = vmatpush.msra.mxu0 0.0
    %141 = vmatpush.msra.mxu0 0.0
    %142 = vmatpush.msra.mxu0 0.0
    %143 = vmatpush.msra.mxu0 0.0
    %144 = vmatpush.msra.mxu0 0.0
    %145 = vmatpush.msra.mxu0 %v68
    %146 = vmatmul.f32.gmra.mxu0 %v59
    %v147 = vpop.f32.mrf.mxu0
    %v148 = vadd.f32 %v43, %v147
    %149 = vdwg.mxu0
    %v150 = vmax.f32 %v88, 0.0
    %v151 = vmax.f32 %v108, 0.0
    %v152 = vmax.f32 %v128, 0.0
    %v153 = vmax.f32 %v148, 0.0
    %v154 = vld [vmem:[%s3] sm:$0xf]
    %v156 = vperm.slane %v154, 0
    %v157 = vperm.slane %v154, 1
    %v158 = vperm.slane %v154, 2
    %v159 = vperm.slane %v154, 3
    %v164 = vmul.f32 %v150, %v156
    %v165 = vmul.f32 %v151, %v157
    %v166 = vmul.f32 %v152, %v158
    %v167 = vmul.f32 %v153, %v159
    %v168 = vadd.f32 %v164, %v165
    %v169 = vadd.f32 %v168, %v166
    %v170 = vadd.f32 %v169, %v167
    %171 = vadd.xlane.f32.xlu0 %v170
    %v172 = vpop.xlane.xlu0 %171
    %s173 = sld [smem:[#allocation2]]
    %v174 = vstv %s173
    %v175 = vadd.f32 %v172, %v174
    %176 = vst [vmem:[%s5] sm:$0xff] %v175
    // Predicated region
    $region26: #{baseline_forward_batched.1} parent=1 // pred_check
      _
    $region27: #{baseline_forward_batched.1} parent=1 // pred_check_branch
      %178 = sbr.rel (0) target = $region29
    $region28: #{baseline_forward_batched.1} parent=1 // pred_region
      _
    $region29: #{baseline_forward_batched.1} parent=1 // pred_fallthru
      _
    // Predicated region
    $region30: #{baseline_forward_batched.1} parent=1 // pred_check
      _
    $region31: #{baseline_forward_batched.1} parent=1 // pred_check_branch
      %180 = sbr.rel (0) target = $region33
    $region32: #{baseline_forward_batched.1} parent=1 // pred_region
      _
    $region33: #{baseline_forward_batched.1} parent=1 // pred_fallthru
      _
    %181 = vsyncpa [#allocation4], 1

</llo_original>
